<compile_context>
chip_gen: v5e
topology: v5e:2x2
jax: 0.10.0
libtpu: 0.0.40
codegen_flags: <defaults>
</compile_context>

<pallas_src>
import functools

import jax
import jax.numpy as jnp
from jax.experimental import pallas as pl
from jax.experimental.pallas import tpu as pltpu

_LN_EPS = 1e-5
_PALLAS_MIN_ROWS = 256  # below this, XLA fusion of 4 tiny ops beats a launch


def _round_up(n, m):
    return ((n + m - 1) // m) * m


# ---------------------------------------------------------------------------
# Kernel: Linear1 -> LayerNorm -> ReLU -> Linear2 for ONE branch row-tile.
# ---------------------------------------------------------------------------
def _emb_branch_kernel(x_ref, w1_ref, vec_ref, w2_ref, o_ref):
    # x_ref  : [tile_m, D]
    # w1_ref : [D, H]
    # vec_ref: [4, H]   rows = b1 | gamma | beta | b2
    # w2_ref : [H, H]
    # o_ref  : [tile_m, H]
    b1 = vec_ref[0:1, :].astype(jnp.float32)
    gamma = vec_ref[1:2, :].astype(jnp.float32)
    beta = vec_ref[2:3, :].astype(jnp.float32)
    b2 = vec_ref[3:4, :].astype(jnp.float32)

    # Linear1 on the MXU; f32 accumulation regardless of storage dtype.
    h = jnp.dot(x_ref[...], w1_ref[...],
                preferred_element_type=jnp.float32) + b1

    # LayerNorm (PyTorch: biased variance, eps inside rsqrt), all f32 math.
    mean = jnp.mean(h, axis=-1, keepdims=True)
    cent = h - mean
    var = jnp.mean(cent * cent, axis=-1, keepdims=True)
    ln = cent * jax.lax.rsqrt(var + _LN_EPS) * gamma + beta

    # ReLU + Linear2 (cast back to storage dtype so bf16 params stay on the
    # MXU's native bf16 datapath; accumulate in f32).
    r = jnp.maximum(ln, 0.0).astype(w2_ref.dtype)
    out = jnp.dot(r, w2_ref[...], preferred_element_type=jnp.float32) + b2
    o_ref[...] = out.astype(o_ref.dtype)


# ---------------------------------------------------------------------------
# Parameter init + packing (packing hoisted out of the forward path).
# ---------------------------------------------------------------------------
def _init_linear(key, fan_in, fan_out):
    # PyTorch nn.Linear default init: U(-1/sqrt(fan_in), 1/sqrt(fan_in))
    kw, kb = jax.random.split(key)
    bound = 1.0 / float(fan_in) ** 0.5
    w = jax.random.uniform(kw, (fan_in, fan_out), jnp.float32, -bound, bound)
    b = jax.random.uniform(kb, (fan_out,), jnp.float32, -bound, bound)
    return w, b


def _pack_branch(p, dtype):
    vec = jnp.stack([p["b1"], p["gamma"], p["beta"], p["b2"]], axis=0)  # [4,H]
    return {"w1": p["w1"].astype(dtype),
            "w2": p["w2"].astype(dtype),
            "vec": vec.astype(dtype)}


def init_skeleton_emb_params(key, t_input_size, s_input_size, hidden_size,
                             dtype=jnp.float32):
    """dtype: storage dtype fed to the kernel (f32, or bf16 on v6e/v7x)."""
    ks = jax.random.split(key, 4)
    t_w1, t_b1 = _init_linear(ks[0], t_input_size, hidden_size)
    t_w2, t_b2 = _init_linear(ks[1], hidden_size, hidden_size)
    s_w1, s_b1 = _init_linear(ks[2], s_input_size, hidden_size)
    s_w2, s_b2 = _init_linear(ks[3], hidden_size, hidden_size)
    ones = jnp.ones((hidden_size,), jnp.float32)
    zeros = jnp.zeros((hidden_size,), jnp.float32)
    params = {
        "t": {"w1": t_w1, "b1": t_b1, "gamma": ones, "beta": zeros,
              "w2": t_w2, "b2": t_b2},
        "s": {"w1": s_w1, "b1": s_b1, "gamma": ones, "beta": zeros,
              "w2": s_w2, "b2": s_b2},
    }
    params["packed"] = {
        "t": _pack_branch(params["t"], dtype),
        "s": _pack_branch(params["s"], dtype),
        "hidden": hidden_size,
    }
    return params


# ---------------------------------------------------------------------------
# Tiling + per-branch pallas_call.
# ---------------------------------------------------------------------------
def _choose_tile_m(n, d_in, hidden, itemsize, vmem_budget_bytes=8 << 20):
    """Rows per grid step.

    Big enough that per-step DMA (>= ~1 MiB at production N) dominates the
    fixed per-grid-step overhead, small enough that double-buffered in+out
    tiles stay inside every generation's scoped-VMEM default, and for large
    N the grid gets >= 2 steps so "parallel" shards across v7x's two TCs.
    """
    per_row = max((d_in + hidden) * itemsize, 1)
    cap = (vmem_budget_bytes // (2 * per_row)) // 8 * 8   # double-buffered
    cap = int(max(8, min(cap, 8192)))
    half = _round_up(-(-n // 2), 8)                       # ceil(n/2), sublane
    return max(8, min(cap, half))


def _branch_forward_pallas(bp, hidden, x2d, out_dtype):
    n, d_in = x2d.shape
    dtype = bp["w1"].dtype
    itemsize = jnp.dtype(dtype).itemsize
    tile_m = _choose_tile_m(n, d_in, hidden, itemsize)
    grid = pl.cdiv(n, tile_m)

    flops = 2 * n * hidden * (d_in + hidden) + 10 * n * hidden
    bytes_accessed = (
        n * d_in * itemsize
        + n * hidden * jnp.dtype(out_dtype).itemsize
        + (d_in * hidden + hidden * hidden + 4 * hidden) * itemsize)

    return pl.pallas_call(
        _emb_branch_kernel,
        out_shape=jax.ShapeDtypeStruct((n, hidden), out_dtype),
        grid_spec=pltpu.PrefetchScalarGridSpec(
            num_scalar_prefetch=0,
            grid=(grid,),
            in_specs=[
                pl.BlockSpec((tile_m, d_in), lambda i: (i, 0)),   # rows tiled
                pl.BlockSpec((d_in, hidden), lambda i: (0, 0)),   # resident
                pl.BlockSpec((4, hidden), lambda i: (0, 0)),      # resident
                pl.BlockSpec((hidden, hidden), lambda i: (0, 0)),  # resident
            ],
            out_specs=pl.BlockSpec((tile_m, hidden), lambda i: (i, 0)),
        ),
        compiler_params=pltpu.CompilerParams(
            dimension_semantics=("parallel",)),
        cost_estimate=pl.CostEstimate(
            flops=int(flops),
            transcendentals=int(n),
            bytes_accessed=int(bytes_accessed)),
    )(x2d.astype(dtype), bp["w1"], bp["vec"], bp["w2"])


def _branch_forward_ref_packed(bp, x2d):
    # Pure-JAX small-batch fallback using the packed params (f32 math).
    w1 = bp["w1"].astype(jnp.float32)
    w2 = bp["w2"].astype(jnp.float32)
    vec = bp["vec"].astype(jnp.float32)
    h = x2d.astype(jnp.float32) @ w1 + vec[0]
    mean = jnp.mean(h, axis=-1, keepdims=True)
    cent = h - mean
    var = jnp.mean(cent * cent, axis=-1, keepdims=True)
    ln = cent * jax.lax.rsqrt(var + _LN_EPS) * vec[1] + vec[2]
    return jnp.maximum(ln, 0.0) @ w2 + vec[3]


def skeleton_emb_forward(params, t_src, s_src, use_pallas=None):
    """t_src: [..., t_input_size], s_src: [..., s_input_size]."""
    packed = params["packed"]
    H = packed["hidden"]

    def run(branch, x):
        lead = x.shape[:-1]
        out_dtype = x.dtype
        x2d = x.reshape(-1, x.shape[-1])
        n = x2d.shape[0]
        go = use_pallas if use_pallas is not None else n >= _PALLAS_MIN_ROWS
        if go:
            y = _branch_forward_pallas(packed[branch], H, x2d, out_dtype)
        else:
            y = _branch_forward_ref_packed(packed[branch], x2d).astype(out_dtype)
        return y.reshape(*lead, H)

    return run("t", t_src), run("s", s_src)


# ---------------------------------------------------------------------------
# Pure-JAX reference (uses the unpacked per-branch f32 params).
# ---------------------------------------------------------------------------
def _reference(params, t_src, s_src):
    def run(branch, x):
        p = params[branch]
        h = x @ p["w1"] + p["b1"]
        mean = jnp.mean(h, axis=-1, keepdims=True)
        var = jnp.mean((h - mean) ** 2, axis=-1, keepdims=True)
        ln = (h - mean) * jax.lax.rsqrt(var + _LN_EPS) * p["gamma"] + p["beta"]
        return jnp.maximum(ln, 0.0) @ p["w2"] + p["b2"]
    return run("t", t_src), run("s", s_src)


if __name__ == "__main__":
    key = jax.random.PRNGKey(0)
    k_params, k_t, k_s = jax.random.split(key, 3)

    # Small, module-consistent shapes (J != T -> exercises the ragged last
    # row-tile and a 2-step row grid in each branch's pallas_call).
    B, T, J = 2, 8, 6
    t_input_size, s_input_size, hidden_size = 48, 24, 32

    params = init_skeleton_emb_params(k_params, t_input_size, s_input_size,
                                      hidden_size, dtype=jnp.float32)
    t_src = jax.random.normal(k_t, (B, T, t_input_size), jnp.float32)
    s_src = jax.random.normal(k_s, (B, J, s_input_size), jnp.float32)

    # Force the Pallas path even at toy shapes so the kernel is exercised.
    fwd = jax.jit(functools.partial(skeleton_emb_forward, params,
                                    use_pallas=True))
    t_out, s_out = fwd(t_src, s_src)
    jax.block_until_ready((t_out, s_out))

    # Sanity check against the pure-JAX reference.
    t_ref, s_ref = _reference(params, t_src, s_src)
    assert t_out.shape == (B, T, hidden_size)
    assert s_out.shape == (B, J, hidden_size)
    assert jnp.allclose(t_out, t_ref, atol=1e-4, rtol=1e-4)
    assert jnp.allclose(s_out, s_ref, atol=1e-4, rtol=1e-4)

    print("KERNEL_OK")
</pallas_src>

<mosaic_0001>
module attributes {stable_mosaic.version = 11 : i64} {
  func.func @_emb_branch_kernel(%arg0: i32, %arg1: memref<8x24xf32, #tpu.memory_space<vmem>>, %arg2: memref<24x32xf32, #tpu.memory_space<vmem>>, %arg3: memref<4x32xf32, #tpu.memory_space<vmem>>, %arg4: memref<32x32xf32, #tpu.memory_space<vmem>>, %arg5: memref<8x32xf32, #tpu.memory_space<vmem>>) attributes {dimension_semantics = [#tpu.dimension_semantics<parallel>], iteration_bounds = array<i64: 2>, scalar_prefetch = 0 : i64, scratch_operands = 0 : i64, tpu.core_type = #tpu.core_type<tc>, window_params = [{transform_indices = @transform_0, window_bounds = array<i64: 8, 24>}, {pipeline_mode = #tpu.pipeline_mode<synchronous>, transform_indices = @transform_1, window_bounds = array<i64: 24, 32>}, {pipeline_mode = #tpu.pipeline_mode<synchronous>, transform_indices = @transform_2, window_bounds = array<i64: 4, 32>}, {pipeline_mode = #tpu.pipeline_mode<synchronous>, transform_indices = @transform_3, window_bounds = array<i64: 32, 32>}, {transform_indices = @transform_4, window_bounds = array<i64: 8, 32>}]} {
    %c0 = arith.constant 0 : index
    %c0_0 = arith.constant 0 : index
    %0 = vector.load %arg3[%c0, %c0_0] : memref<4x32xf32, #tpu.memory_space<vmem>>, vector<1x32xf32>
    %c1 = arith.constant 1 : index
    %c0_1 = arith.constant 0 : index
    %1 = vector.load %arg3[%c1, %c0_1] : memref<4x32xf32, #tpu.memory_space<vmem>>, vector<1x32xf32>
    %c2 = arith.constant 2 : index
    %c0_2 = arith.constant 0 : index
    %2 = vector.load %arg3[%c2, %c0_2] : memref<4x32xf32, #tpu.memory_space<vmem>>, vector<1x32xf32>
    %c3 = arith.constant 3 : index
    %c0_3 = arith.constant 0 : index
    %3 = vector.load %arg3[%c3, %c0_3] : memref<4x32xf32, #tpu.memory_space<vmem>>, vector<1x32xf32>
    %c0_4 = arith.constant 0 : index
    %c0_5 = arith.constant 0 : index
    %4 = vector.load %arg1[%c0_4, %c0_5] : memref<8x24xf32, #tpu.memory_space<vmem>>, vector<8x24xf32>
    %c0_6 = arith.constant 0 : index
    %c0_7 = arith.constant 0 : index
    %5 = vector.load %arg2[%c0_6, %c0_7] : memref<24x32xf32, #tpu.memory_space<vmem>>, vector<24x32xf32>
    %cst = arith.constant dense<0.000000e+00> : vector<8x32xf32>
    %6 = tpu.matmul %4, %5, %cst {dimension_numbers = #tpu.dot_dimension_numbers<[1], [0], [0], [1], [0, 0, 1, 1], [], []>} : vector<8x24xf32>, vector<24x32xf32>, vector<8x32xf32> -> vector<8x32xf32>
    %7 = vector.broadcast %0 : vector<1x32xf32> to vector<8x32xf32>
    %8 = arith.addf %6, %7 : vector<8x32xf32>
    %cst_8 = arith.constant dense<0.000000e+00> : vector<8xf32>
    %9 = vector.multi_reduction <add>, %8, %cst_8 [1] : vector<8x32xf32> to vector<8xf32>
    %10 = vector.shape_cast %9 : vector<8xf32> to vector<8x1xf32>
    %cst_9 = arith.constant 3.200000e+01 : f32
    %11 = vector.broadcast %cst_9 : f32 to vector<8x1xf32>
    %12 = arith.divf %10, %11 : vector<8x1xf32>
    %13 = vector.broadcast %12 : vector<8x1xf32> to vector<8x32xf32>
    %14 = arith.subf %8, %13 : vector<8x32xf32>
    %15 = arith.mulf %14, %14 : vector<8x32xf32>
    %cst_10 = arith.constant dense<0.000000e+00> : vector<8xf32>
    %16 = vector.multi_reduction <add>, %15, %cst_10 [1] : vector<8x32xf32> to vector<8xf32>
    %17 = vector.shape_cast %16 : vector<8xf32> to vector<8x1xf32>
    %cst_11 = arith.constant 3.200000e+01 : f32
    %18 = vector.broadcast %cst_11 : f32 to vector<8x1xf32>
    %19 = arith.divf %17, %18 : vector<8x1xf32>
    %cst_12 = arith.constant 9.99999974E-6 : f32
    %20 = vector.broadcast %cst_12 : f32 to vector<8x1xf32>
    %21 = arith.addf %19, %20 : vector<8x1xf32>
    %22 = math.rsqrt %21 : vector<8x1xf32>
    %23 = vector.broadcast %22 : vector<8x1xf32> to vector<8x32xf32>
    %24 = arith.mulf %14, %23 : vector<8x32xf32>
    %25 = vector.broadcast %1 : vector<1x32xf32> to vector<8x32xf32>
    %26 = arith.mulf %24, %25 : vector<8x32xf32>
    %27 = vector.broadcast %2 : vector<1x32xf32> to vector<8x32xf32>
    %28 = arith.addf %26, %27 : vector<8x32xf32>
    %cst_13 = arith.constant 0.000000e+00 : f32
    %29 = vector.broadcast %cst_13 : f32 to vector<8x32xf32>
    %30 = arith.maximumf %28, %29 : vector<8x32xf32>
    %c0_14 = arith.constant 0 : index
    %c0_15 = arith.constant 0 : index
    %31 = vector.load %arg4[%c0_14, %c0_15] : memref<32x32xf32, #tpu.memory_space<vmem>>, vector<32x32xf32>
    %cst_16 = arith.constant dense<0.000000e+00> : vector<8x32xf32>
    %32 = tpu.matmul %30, %31, %cst_16 {dimension_numbers = #tpu.dot_dimension_numbers<[1], [0], [0], [1], [0, 0, 1, 1], [], []>} : vector<8x32xf32>, vector<32x32xf32>, vector<8x32xf32> -> vector<8x32xf32>
    %33 = vector.broadcast %3 : vector<1x32xf32> to vector<8x32xf32>
    %34 = arith.addf %32, %33 : vector<8x32xf32>
    %c0_17 = arith.constant 0 : index
    %c0_18 = arith.constant 0 : index
    %35 = vector.load %arg5[%c0_17, %c0_18] : memref<8x32xf32, #tpu.memory_space<vmem>>, vector<8x32xf32>
    tpu.vector_store %arg5[%c0_17, %c0_18], %34 {strides = array<i32>} : memref<8x32xf32, #tpu.memory_space<vmem>>, vector<8x32xf32>,
    return
  }
  func.func @transform_0(%arg0: i32) -> (i32, i32) {
    %c0_i32 = arith.constant 0 : i32
    %c0_i32_0 = arith.constant 0 : i32
    return %arg0, %c0_i32 : i32, i32
  }
  func.func @transform_1(%arg0: i32) -> (i32, i32) {
    %c0_i32 = arith.constant 0 : i32
    %c0_i32_0 = arith.constant 0 : i32
    %c0_i32_1 = arith.constant 0 : i32
    return %c0_i32, %c0_i32_0 : i32, i32
  }
  func.func @transform_2(%arg0: i32) -> (i32, i32) {
    %c0_i32 = arith.constant 0 : i32
    %c0_i32_0 = arith.constant 0 : i32
    %c0_i32_1 = arith.constant 0 : i32
    return %c0_i32, %c0_i32_0 : i32, i32
  }
  func.func @transform_3(%arg0: i32) -> (i32, i32) {
    %c0_i32 = arith.constant 0 : i32
    %c0_i32_0 = arith.constant 0 : i32
    %c0_i32_1 = arith.constant 0 : i32
    return %c0_i32, %c0_i32_0 : i32, i32
  }
  func.func @transform_4(%arg0: i32) -> (i32, i32) {
    %c0_i32 = arith.constant 0 : i32
    %c0_i32_0 = arith.constant 0 : i32
    return %arg0, %c0_i32 : i32, i32
  }
}

module attributes {stable_mosaic.version = 11 : i64} {
  func.func @_emb_branch_kernel(%arg0: i32, %arg1: memref<8x48xf32, #tpu.memory_space<vmem>>, %arg2: memref<48x32xf32, #tpu.memory_space<vmem>>, %arg3: memref<4x32xf32, #tpu.memory_space<vmem>>, %arg4: memref<32x32xf32, #tpu.memory_space<vmem>>, %arg5: memref<8x32xf32, #tpu.memory_space<vmem>>) attributes {dimension_semantics = [#tpu.dimension_semantics<parallel>], iteration_bounds = array<i64: 2>, scalar_prefetch = 0 : i64, scratch_operands = 0 : i64, tpu.core_type = #tpu.core_type<tc>, window_params = [{transform_indices = @transform_0, window_bounds = array<i64: 8, 48>}, {pipeline_mode = #tpu.pipeline_mode<synchronous>, transform_indices = @transform_1, window_bounds = array<i64: 48, 32>}, {pipeline_mode = #tpu.pipeline_mode<synchronous>, transform_indices = @transform_2, window_bounds = array<i64: 4, 32>}, {pipeline_mode = #tpu.pipeline_mode<synchronous>, transform_indices = @transform_3, window_bounds = array<i64: 32, 32>}, {transform_indices = @transform_4, window_bounds = array<i64: 8, 32>}]} {
    %c0 = arith.constant 0 : index
    %c0_0 = arith.constant 0 : index
    %0 = vector.load %arg3[%c0, %c0_0] : memref<4x32xf32, #tpu.memory_space<vmem>>, vector<1x32xf32>
    %c1 = arith.constant 1 : index
    %c0_1 = arith.constant 0 : index
    %1 = vector.load %arg3[%c1, %c0_1] : memref<4x32xf32, #tpu.memory_space<vmem>>, vector<1x32xf32>
    %c2 = arith.constant 2 : index
    %c0_2 = arith.constant 0 : index
    %2 = vector.load %arg3[%c2, %c0_2] : memref<4x32xf32, #tpu.memory_space<vmem>>, vector<1x32xf32>
    %c3 = arith.constant 3 : index
    %c0_3 = arith.constant 0 : index
    %3 = vector.load %arg3[%c3, %c0_3] : memref<4x32xf32, #tpu.memory_space<vmem>>, vector<1x32xf32>
    %c0_4 = arith.constant 0 : index
    %c0_5 = arith.constant 0 : index
    %4 = vector.load %arg1[%c0_4, %c0_5] : memref<8x48xf32, #tpu.memory_space<vmem>>, vector<8x48xf32>
    %c0_6 = arith.constant 0 : index
    %c0_7 = arith.constant 0 : index
    %5 = vector.load %arg2[%c0_6, %c0_7] : memref<48x32xf32, #tpu.memory_space<vmem>>, vector<48x32xf32>
    %cst = arith.constant dense<0.000000e+00> : vector<8x32xf32>
    %6 = tpu.matmul %4, %5, %cst {dimension_numbers = #tpu.dot_dimension_numbers<[1], [0], [0], [1], [0, 0, 1, 1], [], []>} : vector<8x48xf32>, vector<48x32xf32>, vector<8x32xf32> -> vector<8x32xf32>
    %7 = vector.broadcast %0 : vector<1x32xf32> to vector<8x32xf32>
    %8 = arith.addf %6, %7 : vector<8x32xf32>
    %cst_8 = arith.constant dense<0.000000e+00> : vector<8xf32>
    %9 = vector.multi_reduction <add>, %8, %cst_8 [1] : vector<8x32xf32> to vector<8xf32>
    %10 = vector.shape_cast %9 : vector<8xf32> to vector<8x1xf32>
    %cst_9 = arith.constant 3.200000e+01 : f32
    %11 = vector.broadcast %cst_9 : f32 to vector<8x1xf32>
    %12 = arith.divf %10, %11 : vector<8x1xf32>
    %13 = vector.broadcast %12 : vector<8x1xf32> to vector<8x32xf32>
    %14 = arith.subf %8, %13 : vector<8x32xf32>
    %15 = arith.mulf %14, %14 : vector<8x32xf32>
    %cst_10 = arith.constant dense<0.000000e+00> : vector<8xf32>
    %16 = vector.multi_reduction <add>, %15, %cst_10 [1] : vector<8x32xf32> to vector<8xf32>
    %17 = vector.shape_cast %16 : vector<8xf32> to vector<8x1xf32>
    %cst_11 = arith.constant 3.200000e+01 : f32
    %18 = vector.broadcast %cst_11 : f32 to vector<8x1xf32>
    %19 = arith.divf %17, %18 : vector<8x1xf32>
    %cst_12 = arith.constant 9.99999974E-6 : f32
    %20 = vector.broadcast %cst_12 : f32 to vector<8x1xf32>
    %21 = arith.addf %19, %20 : vector<8x1xf32>
    %22 = math.rsqrt %21 : vector<8x1xf32>
    %23 = vector.broadcast %22 : vector<8x1xf32> to vector<8x32xf32>
    %24 = arith.mulf %14, %23 : vector<8x32xf32>
    %25 = vector.broadcast %1 : vector<1x32xf32> to vector<8x32xf32>
    %26 = arith.mulf %24, %25 : vector<8x32xf32>
    %27 = vector.broadcast %2 : vector<1x32xf32> to vector<8x32xf32>
    %28 = arith.addf %26, %27 : vector<8x32xf32>
    %cst_13 = arith.constant 0.000000e+00 : f32
    %29 = vector.broadcast %cst_13 : f32 to vector<8x32xf32>
    %30 = arith.maximumf %28, %29 : vector<8x32xf32>
    %c0_14 = arith.constant 0 : index
    %c0_15 = arith.constant 0 : index
    %31 = vector.load %arg4[%c0_14, %c0_15] : memref<32x32xf32, #tpu.memory_space<vmem>>, vector<32x32xf32>
    %cst_16 = arith.constant dense<0.000000e+00> : vector<8x32xf32>
    %32 = tpu.matmul %30, %31, %cst_16 {dimension_numbers = #tpu.dot_dimension_numbers<[1], [0], [0], [1], [0, 0, 1, 1], [], []>} : vector<8x32xf32>, vector<32x32xf32>, vector<8x32xf32> -> vector<8x32xf32>
    %33 = vector.broadcast %3 : vector<1x32xf32> to vector<8x32xf32>
    %34 = arith.addf %32, %33 : vector<8x32xf32>
    %c0_17 = arith.constant 0 : index
    %c0_18 = arith.constant 0 : index
    %35 = vector.load %arg5[%c0_17, %c0_18] : memref<8x32xf32, #tpu.memory_space<vmem>>, vector<8x32xf32>
    tpu.vector_store %arg5[%c0_17, %c0_18], %34 {strides = array<i32>} : memref<8x32xf32, #tpu.memory_space<vmem>>, vector<8x32xf32>,
    return
  }
  func.func @transform_0(%arg0: i32) -> (i32, i32) {
    %c0_i32 = arith.constant 0 : i32
    %c0_i32_0 = arith.constant 0 : i32
    return %arg0, %c0_i32 : i32, i32
  }
  func.func @transform_1(%arg0: i32) -> (i32, i32) {
    %c0_i32 = arith.constant 0 : i32
    %c0_i32_0 = arith.constant 0 : i32
    %c0_i32_1 = arith.constant 0 : i32
    return %c0_i32, %c0_i32_0 : i32, i32
  }
  func.func @transform_2(%arg0: i32) -> (i32, i32) {
    %c0_i32 = arith.constant 0 : i32
    %c0_i32_0 = arith.constant 0 : i32
    %c0_i32_1 = arith.constant 0 : i32
    return %c0_i32, %c0_i32_0 : i32, i32
  }
  func.func @transform_3(%arg0: i32) -> (i32, i32) {
    %c0_i32 = arith.constant 0 : i32
    %c0_i32_0 = arith.constant 0 : i32
    %c0_i32_1 = arith.constant 0 : i32
    return %c0_i32, %c0_i32_0 : i32, i32
  }
  func.func @transform_4(%arg0: i32) -> (i32, i32) {
    %c0_i32 = arith.constant 0 : i32
    %c0_i32_0 = arith.constant 0 : i32
    return %arg0, %c0_i32 : i32, i32
  }
}

</mosaic_0001>

<llo_original>
// kernel: skeleton_emb_forward.3
$region0: #{skeleton_emb_forward.3}
  #allocation0 [shape = 'u32[]', space=smem, size = 0x4, offset = 0x4, fixed_abs, tag = 'smem constant byte address 0x4 - core index']
  #allocation1 [shape = 'u32[72,128]{1,0:T(1,128)}', space=vmem, size = 0x9000, scoped, tag = 'internal scratch']
  %s0 = inlined_call_operand.vmem [shape: f32[12,24], index: 0, kind: input, shape index: {}]
  %s1 = inlined_call_operand.vmem [shape: f32[24,32], index: 1, kind: input, shape index: {}]
  %s2 = inlined_call_operand.vmem [shape: f32[4,32], index: 2, kind: input, shape index: {}]
  %s3 = inlined_call_operand.vmem [shape: f32[32,32], index: 3, kind: input, shape index: {}]
  %s4 = inlined_call_operand.vmem [shape: f32[12,32], index: 4, kind: output, shape index: {}]
  %s5 = sld [smem:[#allocation0]]
  $region49: #{skeleton_emb_forward.3} parent=0
    _
  %s7 = ssub.s32 1, %s5
  %s8 = scalar_select 0, %s7, %s5
  loop: start=0, step=1, limit=4
  $region2: #{skeleton_emb_forward.3} parent=0 // loop_pre_header
    _
  $region3: #{skeleton_emb_forward.3} parent=0 // loop_header
    %s10 = sphi 0, %s14
    %p11 = scmp.ge.s32.totalorder %s10, 4
    %s20 = sphi 0, %s22
    %s23 = sphi 0, %s20
    %s24 = sphi 0, %s23
    %s40 = sphi 0, %s24
    %s44 = sphi 0, %s44
    %s46 = sphi 0, %s44
    %s47 = sphi 0, %s46
    %s61 = sphi 0, %s47
    %s65 = sphi 0, %s65
    %s67 = sphi 0, %s65
    %s68 = sphi 0, %s67
    %s82 = sphi 0, %s68
    %s86 = sphi 0, %s86
    %s88 = sphi 0, %s86
    %s89 = sphi 0, %s88
    %s103 = sphi 0, %s89
    %s109 = sphi 0, %s111
    %s112 = sphi 0, %s109
    %s113 = sphi 0, %s112
    %s129 = sphi 0, %s113
  $region4: #{skeleton_emb_forward.3} parent=0 // loop_header_branch
    %13 = sbr.rel (%p11) target = $region8
  $region5: #{skeleton_emb_forward.3} parent=0 // loop_body
    %s15 = ssub.s32 %s10, 1
    %s16 = ssub.s32 %s10, 2
    %s17 = sadd.s32 %s10, 1
    %s18 = ssub.s32 %s10, %s17
    %p19 = scmp.eq.s32.totalorder %s18, 0
    %s21 = sadd.s32 %s20, 1
    %s22 = scalar_select %p19, %s20, %s21
    %p25 = pneg %p19
    %p26 = scmp.eq.s32.totalorder %s10, 1
    %p27 = por %p25, %p26
    %p28 = scmp.ne.s32.totalorder %s20, %s23
    %p29 = scmp.eq.s32.totalorder %s10, 0
    %p30 = por %p28, %p29
    %p31 = scmp.ne.s32.totalorder %s20, %s23
    %p32 = scmp.eq.s32.totalorder %s15, 1
    %p33 = por %p31, %p32
    %p34 = scmp.ne.s32.totalorder %s23, %s24
    %p35 = scmp.eq.s32.totalorder %s15, 0
    %p36 = por %p34, %p35
    %p37 = scmp.ne.s32.totalorder %s23, %s24
    %p38 = scmp.eq.s32.totalorder %s16, 1
    %p39 = por %p37, %p38
    %p41 = scmp.ne.s32.totalorder %s24, %s40
    %p42 = scmp.eq.s32.totalorder %s16, 0
    %p43 = por %p41, %p42
    %s45 = sadd.s32 %s44, 1
    %p48 = scmp.eq.s32.totalorder %s10, 1
    %p49 = scmp.ne.s32.totalorder %s44, %s46
    %p50 = scmp.eq.s32.totalorder %s10, 0
    %p51 = por %p49, %p50
    %p52 = scmp.ne.s32.totalorder %s44, %s46
    %p53 = scmp.eq.s32.totalorder %s15, 1
    %p54 = por %p52, %p53
    %p55 = scmp.ne.s32.totalorder %s46, %s47
    %p56 = scmp.eq.s32.totalorder %s15, 0
    %p57 = por %p55, %p56
    %p58 = scmp.ne.s32.totalorder %s46, %s47
    %p59 = scmp.eq.s32.totalorder %s16, 1
    %p60 = por %p58, %p59
    %p62 = scmp.ne.s32.totalorder %s47, %s61
    %p63 = scmp.eq.s32.totalorder %s16, 0
    %p64 = por %p62, %p63
    %s66 = sadd.s32 %s65, 1
    %p69 = scmp.eq.s32.totalorder %s10, 1
    %p70 = scmp.ne.s32.totalorder %s65, %s67
    %p71 = scmp.eq.s32.totalorder %s10, 0
    %p72 = por %p70, %p71
    %p73 = scmp.ne.s32.totalorder %s65, %s67
    %p74 = scmp.eq.s32.totalorder %s15, 1
    %p75 = por %p73, %p74
    %p76 = scmp.ne.s32.totalorder %s67, %s68
    %p77 = scmp.eq.s32.totalorder %s15, 0
    %p78 = por %p76, %p77
    %p79 = scmp.ne.s32.totalorder %s67, %s68
    %p80 = scmp.eq.s32.totalorder %s16, 1
    %p81 = por %p79, %p80
    %p83 = scmp.ne.s32.totalorder %s68, %s82
    %p84 = scmp.eq.s32.totalorder %s16, 0
    %p85 = por %p83, %p84
    %s87 = sadd.s32 %s86, 1
    %p90 = scmp.eq.s32.totalorder %s10, 1
    %p91 = scmp.ne.s32.totalorder %s86, %s88
    %p92 = scmp.eq.s32.totalorder %s10, 0
    %p93 = por %p91, %p92
    %p94 = scmp.ne.s32.totalorder %s86, %s88
    %p95 = scmp.eq.s32.totalorder %s15, 1
    %p96 = por %p94, %p95
    %p97 = scmp.ne.s32.totalorder %s88, %s89
    %p98 = scmp.eq.s32.totalorder %s15, 0
    %p99 = por %p97, %p98
    %p100 = scmp.ne.s32.totalorder %s88, %s89
    %p101 = scmp.eq.s32.totalorder %s16, 1
    %p102 = por %p100, %p101
    %p104 = scmp.ne.s32.totalorder %s89, %s103
    %p105 = scmp.eq.s32.totalorder %s16, 0
    %p106 = por %p104, %p105
    %s107 = ssub.s32 %s10, %s17
    %p108 = scmp.eq.s32.totalorder %s107, 0
    %s110 = sadd.s32 %s109, 1
    %s111 = scalar_select %p108, %s109, %s110
    %p114 = pneg %p108
    %p115 = scmp.eq.s32.totalorder %s10, 1
    %p116 = por %p114, %p115
    %p117 = scmp.ne.s32.totalorder %s109, %s112
    %p118 = scmp.eq.s32.totalorder %s10, 0
    %p119 = por %p117, %p118
    %p120 = scmp.ne.s32.totalorder %s109, %s112
    %p121 = scmp.eq.s32.totalorder %s15, 1
    %p122 = por %p120, %p121
    %p123 = scmp.ne.s32.totalorder %s112, %s113
    %p124 = scmp.eq.s32.totalorder %s15, 0
    %p125 = por %p123, %p124
    %p126 = scmp.ne.s32.totalorder %s112, %s113
    %p127 = scmp.eq.s32.totalorder %s16, 1
    %p128 = por %p126, %p127
    %p130 = scmp.ne.s32.totalorder %s113, %s129
    %p131 = scmp.eq.s32.totalorder %s16, 0
    %p132 = por %p130, %p131
    %p133 = scmp.le.s32.totalorder 1, %s10
    %p134 = scmp.lt.s32.totalorder %s10, 3
    %p135 = pnand %p133, %p134
    %p136 = pneg %p135
    // Predicated region
    $region9: #{skeleton_emb_forward.3} parent=5 // pred_check
      _
    $region10: #{skeleton_emb_forward.3} parent=5 // pred_check_branch
      %138 = sbr.rel (%p135) target = $region12
    $region11: #{skeleton_emb_forward.3} parent=5 // pred_region
      %s139 = ssub.s32 %s10, 1
      // Predicated region
      $region13: #{skeleton_emb_forward.3} parent=11 // pred_check
        %p140 = pneg %p57
      $region14: #{skeleton_emb_forward.3} parent=11 // pred_check_branch
        %142 = sbr.rel (%p140) target = $region16
      $region15: #{skeleton_emb_forward.3} parent=11 // pred_region
        _
      $region16: #{skeleton_emb_forward.3} parent=11 // pred_fallthru
        _
      // Predicated region
      $region17: #{skeleton_emb_forward.3} parent=11 // pred_check
        %p143 = pneg %p78
      $region18: #{skeleton_emb_forward.3} parent=11 // pred_check_branch
        %145 = sbr.rel (%p143) target = $region20
      $region19: #{skeleton_emb_forward.3} parent=11 // pred_region
        _
      $region20: #{skeleton_emb_forward.3} parent=11 // pred_fallthru
        _
      // Predicated region
      $region21: #{skeleton_emb_forward.3} parent=11 // pred_check
        %p146 = pneg %p99
      $region22: #{skeleton_emb_forward.3} parent=11 // pred_check_branch
        %148 = sbr.rel (%p146) target = $region24
      $region23: #{skeleton_emb_forward.3} parent=11 // pred_region
        _
      $region24: #{skeleton_emb_forward.3} parent=11 // pred_fallthru
        _
    $region12: #{skeleton_emb_forward.3} parent=5 // pred_fallthru
      _
    %p149 = scmp.lt.s32.totalorder %s10, 2
    // Predicated region
    $region25: #{skeleton_emb_forward.3} parent=5 // pred_check
      %p150 = pneg %p149
    $region26: #{skeleton_emb_forward.3} parent=5 // pred_check_branch
      %152 = sbr.rel (%p150) target = $region28
    $region27: #{skeleton_emb_forward.3} parent=5 // pred_region
      // Predicated region
      $region29: #{skeleton_emb_forward.3} parent=27 // pred_check
        %p153 = pneg %p30
      $region30: #{skeleton_emb_forward.3} parent=27 // pred_check_branch
        %155 = sbr.rel (%p153) target = $region32
      $region31: #{skeleton_emb_forward.3} parent=27 // pred_region
        %p156 = scmp.lt.s32.totalorder %s10, 1
        %s157 = scalar_select %p156, %s10, 1
        %s158 = smul.addr %s157, 8
        %s159 = scalar_lea.vmem %s0, %s158
      $region32: #{skeleton_emb_forward.3} parent=27 // pred_fallthru
        _
    $region28: #{skeleton_emb_forward.3} parent=5 // pred_fallthru
      _
    %p160 = scmp.le.s32.totalorder 1, %s10
    %p161 = scmp.lt.s32.totalorder %s10, 3
    %p162 = pnand %p160, %p161
    %p163 = pneg %p162
    // Predicated region
    $region33: #{skeleton_emb_forward.3} parent=5 // pred_check
      _
    $region34: #{skeleton_emb_forward.3} parent=5 // pred_check_branch
      %165 = sbr.rel (%p162) target = $region36
    $region35: #{skeleton_emb_forward.3} parent=5 // pred_region
      %s166 = ssub.s32 %s10, 1
      %p167 = scmp.lt.s32.totalorder %s15, 1
      %s168 = scalar_select %p167, %s15, 1
      %s169 = smul.addr %s168, 8
      %s170 = scalar_lea.vmem %s0, %s169
      %p171 = pneg %p36
      %p172 = pneg %p33
      %p173 = pneg %p57
      %p174 = pneg %p54
      %p175 = pneg %p78
      %p176 = pneg %p75
      %p177 = pneg %p99
      %p178 = pneg %p96
      %p179 = pneg %p125
      %p180 = pneg %p122
      %p181 = scmp.lt.s32.totalorder %s15, 1
      %s182 = scalar_select %p181, %s15, 1
      %s183 = smul.addr %s182, 8
      %s184 = scalar_lea.vmem %s4, %s183
      %p185 = scmp.lt.s32.totalorder %s15, 1
      %s186 = scalar_select %p185, %s15, 1
      %s187 = smul.addr %s186, 8
      %s188 = scalar_lea.vmem %s0, %s187
      %p189 = scmp.lt.s32.totalorder %s15, 1
      %s190 = scalar_select %p189, %s15, 1
      %s191 = smul.addr %s190, 8
      %s192 = scalar_lea.vmem %s4, %s191
      %v193 = vld [vmem:[%s2] sm:$0x1]
      %v194 = vld [vmem:[%s2 + $0x1] sm:$0x1]
      %v195 = vld [vmem:[%s2 + $0x2] sm:$0x1]
      %v196 = vld [vmem:[%s2 + $0x3] sm:$0x1]
      %v197 = vld [vmem:[%s188] sm:$0xff]
      %v198 = vld [vmem:[%s1] sm:$0xff]
      %v199 = vld [vmem:[%s1 + $0x8] sm:$0xff]
      %v200 = vld [vmem:[%s1 + $0x10] sm:$0xff]
      %v201 = vperm.slane %v193, 0
      %vm202 = vcmask 195584
      %v204 = vsel %vm202, %v197, 0
      %206 = vmatpush.msra.mxu0 0.0
      %207 = vmatpush.msra.mxu0 0.0
      %208 = vmatpush.msra.mxu0 0.0
      %209 = vmatpush.msra.mxu0 0.0
      %210 = vmatpush.msra.mxu0 0.0
      %211 = vmatpush.msra.mxu0 0.0
      %212 = vmatpush.msra.mxu0 0.0
      %213 = vmatpush.msra.mxu0 0.0
      %214 = vmatpush.msra.mxu0 0.0
      %215 = vmatpush.msra.mxu0 0.0
      %216 = vmatpush.msra.mxu0 0.0
      %217 = vmatpush.msra.mxu0 0.0
      %218 = vmatpush.msra.mxu0 0.0
      %219 = vmatpush.msra.mxu0 %v200
      %220 = vmatpush.msra.mxu0 %v199
      %221 = vmatpush.msra.mxu0 %v198
      %222 = vmatmul.f32.gmra.mxu0 %v204
      %v223 = vpop.f32.mrf.mxu0
      %v224 = vadd.f32 %v201, %v223
      %225 = vdwg.mxu0
      %vm226 = vcmask 261120
      %v227 = vsel %vm226, %v224, 0.0
      %228 = vadd.xlane.f32.xlu0 %v227
      %v229 = vpop.xlane.xlu0 %228
      %v230 = vrcp.pop 32.0
      %v231 = vmul.f32 32.0, %v230
      %v232 = vsub.f32 1.0, %v231
      %v233 = vmul.f32 %v230, %v232
      %v234 = vadd.f32 %v230, %v233
      %vm235 = vweird.f32 %v230
      %v236 = vsel %vm235, %v230, %v234
      %v237 = vmul.f32 %v229, %v236
      %v238 = vsub.f32 %v224, %v237
      %v239 = vmul.f32 %v238, %v238
      %v240 = vsel %vm226, %v239, 0.0
      %241 = vadd.xlane.f32.xlu0 %v240
      %v242 = vpop.xlane.xlu0 %241
      %v243 = vmul.f32 %v242, %v236
      %v244 = vadd.f32 %v243, 1e-05
      %v245 = vrsqrt.pop %v244
      %v246 = vmul.f32 %v245, %v244
      %v247 = vmul.f32 %v246, %v245
      %v248 = vmul.f32 0.5, %v247
      %v249 = vsub.f32 1.5, %v248
      %v250 = vmul.f32 %v245, %v249
      %vm251 = vweird.f32 %v244
      %vm252 = vweird.f32 %v245
      %vm253 = vmor %vm251, %vm252
      %v254 = vsel %vm253, %v245, %v250
      %v255 = vmul.f32 %v238, %v254
      %v256 = vperm.slane %v194, 0
      %v257 = vmul.f32 %v255, %v256
      %v258 = vperm.slane %v195, 0
      %v259 = vadd.f32 %v257, %v258
      %v260 = vmax.f32 %v259, 0.0
      %v261 = vld [vmem:[%s3] sm:$0xff]
      %v262 = vld [vmem:[%s3 + $0x8] sm:$0xff]
      %v263 = vld [vmem:[%s3 + $0x10] sm:$0xff]
      %v264 = vld [vmem:[%s3 + $0x18] sm:$0xff]
      %v265 = vperm.slane %v196, 0
      %v267 = vsel %vm226, %v260, 0
      %269 = vmatpush.msra.mxu0 0.0
      %270 = vmatpush.msra.mxu0 0.0
      %271 = vmatpush.msra.mxu0 0.0
      %272 = vmatpush.msra.mxu0 0.0
      %273 = vmatpush.msra.mxu0 0.0
      %274 = vmatpush.msra.mxu0 0.0
      %275 = vmatpush.msra.mxu0 0.0
      %276 = vmatpush.msra.mxu0 0.0
      %277 = vmatpush.msra.mxu0 0.0
      %278 = vmatpush.msra.mxu0 0.0
      %279 = vmatpush.msra.mxu0 0.0
      %280 = vmatpush.msra.mxu0 0.0
      %281 = vmatpush.msra.mxu0 %v264
      %282 = vmatpush.msra.mxu0 %v263
      %283 = vmatpush.msra.mxu0 %v262
      %284 = vmatpush.msra.mxu0 %v261
      %285 = vmatmul.f32.gmra.mxu0 %v267
      %v286 = vpop.f32.mrf.mxu0
      %v287 = vadd.f32 %v265, %v286
      %288 = vdwg.mxu0
      %289 = vst.msk [vmem:[%s192] sm:$0xff] %vm226, %v287
      %p290 = scmp.lt.s32.totalorder %s15, 1
      %s291 = scalar_select %p290, %s15, 1
      %s292 = smul.addr %s291, 8
      %s293 = scalar_lea.vmem %s4, %s292
      // Predicated region
      $region37: #{skeleton_emb_forward.3} parent=35 // pred_check
        %p294 = pneg %p122
      $region38: #{skeleton_emb_forward.3} parent=35 // pred_check_branch
        %296 = sbr.rel (%p294) target = $region40
      $region39: #{skeleton_emb_forward.3} parent=35 // pred_region
        _
      $region40: #{skeleton_emb_forward.3} parent=35 // pred_fallthru
        _
    $region36: #{skeleton_emb_forward.3} parent=5 // pred_fallthru
      _
    %p297 = scmp.le.s32.totalorder 2, %s10
    // Predicated region
    $region41: #{skeleton_emb_forward.3} parent=5 // pred_check
      %p298 = pneg %p297
    $region42: #{skeleton_emb_forward.3} parent=5 // pred_check_branch
      %300 = sbr.rel (%p298) target = $region44
    $region43: #{skeleton_emb_forward.3} parent=5 // pred_region
      %s301 = ssub.s32 %s10, 2
      // Predicated region
      $region45: #{skeleton_emb_forward.3} parent=43 // pred_check
        %p302 = pneg %p128
      $region46: #{skeleton_emb_forward.3} parent=43 // pred_check_branch
        %304 = sbr.rel (%p302) target = $region48
      $region47: #{skeleton_emb_forward.3} parent=43 // pred_region
        %p305 = scmp.lt.s32.totalorder %s16, 1
        %s306 = scalar_select %p305, %s16, 1
        %s307 = smul.addr %s306, 8
        %s308 = scalar_lea.vmem %s4, %s307
      $region48: #{skeleton_emb_forward.3} parent=43 // pred_fallthru
        _
    $region44: #{skeleton_emb_forward.3} parent=5 // pred_fallthru
      _
  $region6: #{skeleton_emb_forward.3} parent=0 // loop_footer
    %s14 = sadd.s32 1, %s10
  $region7: #{skeleton_emb_forward.3} parent=0 // loop_footer_branch
    %9 = sbr.rel target = $region3
  $region8: #{skeleton_emb_forward.3} parent=0 // loop_exit
    _

// kernel: skeleton_emb_forward.2
$region0: #{skeleton_emb_forward.2}
  #allocation0 [shape = 'u32[]', space=smem, size = 0x4, offset = 0x4, fixed_abs, tag = 'smem constant byte address 0x4 - core index']
  #allocation1 [shape = 'u32[72,128]{1,0:T(1,128)}', space=vmem, size = 0x9000, scoped, tag = 'internal scratch']
  %s0 = inlined_call_operand.hbm [shape: f32[16,48], index: 0, kind: input, shape index: {}]
  %s1 = inlined_call_operand.vmem [shape: f32[48,32], index: 1, kind: input, shape index: {}]
  %s2 = inlined_call_operand.vmem [shape: f32[4,32], index: 2, kind: input, shape index: {}]
  %s3 = inlined_call_operand.vmem [shape: f32[32,32], index: 3, kind: input, shape index: {}]
  %s4 = inlined_call_operand.hbm [shape: f32[16,32], index: 4, kind: output, shape index: {}]
  %s5 = sld [smem:[#allocation0]]
  $region53: #{skeleton_emb_forward.2} parent=0
    _
  %s7 = ssub.s32 1, %s5
  %s8 = scalar_select 0, %s7, %s5
  $region1: #{skeleton_emb_forward.2} parent=0
    #allocation2 [shape = 'u8[8192]{0}', space=vmem, size = 0x2000, scoped, tag = 'input window, operand 0']
    #allocation3 [shape = 's32[2]{0}', space=sflag, size = 0x8, scoped, tag = 'scoped memory for skeleton_emb_forward.2']
    #allocation4 [shape = 's32[2]{0}', space=sflag, size = 0x8, scoped, tag = 'scoped memory for skeleton_emb_forward.2']
    #allocation5 [shape = 'u8[8192]{0}', space=vmem, size = 0x2000, scoped, tag = 'output window, operand 0']
    %9 = vsyncpa [#allocation3], 0
    %s10 = scalar_lea.sflag [#allocation3], 1
    %11 = vsyncpa %s10, 0
    %12 = vsyncpa [#allocation4], 0
    %s13 = scalar_lea.sflag [#allocation4], 1
    %14 = vsyncpa %s13, 0
    loop: start=0, step=1, limit=4
    $region2: #{skeleton_emb_forward.2} parent=1 // loop_pre_header
      _
    $region3: #{skeleton_emb_forward.2} parent=1 // loop_header
      %s16 = sphi 0, %s20
      %p17 = scmp.ge.s32.totalorder %s16, 4
      %s26 = sphi 0, %s28
      %s29 = sphi 0, %s26
      %s30 = sphi 0, %s29
      %s46 = sphi 0, %s30
      %s50 = sphi 0, %s50
      %s52 = sphi 0, %s50
      %s53 = sphi 0, %s52
      %s67 = sphi 0, %s53
      %s71 = sphi 0, %s71
      %s73 = sphi 0, %s71
      %s74 = sphi 0, %s73
      %s88 = sphi 0, %s74
      %s92 = sphi 0, %s92
      %s94 = sphi 0, %s92
      %s95 = sphi 0, %s94
      %s109 = sphi 0, %s95
      %s115 = sphi 0, %s117
      %s118 = sphi 0, %s115
      %s119 = sphi 0, %s118
      %s135 = sphi 0, %s119
    $region4: #{skeleton_emb_forward.2} parent=1 // loop_header_branch
      %19 = sbr.rel (%p17) target = $region8
    $region5: #{skeleton_emb_forward.2} parent=1 // loop_body
      %s21 = ssub.s32 %s16, 1
      %s22 = ssub.s32 %s16, 2
      %s23 = sadd.s32 %s16, 1
      %s24 = ssub.s32 %s16, %s23
      %p25 = scmp.eq.s32.totalorder %s24, 0
      %s27 = sadd.s32 %s26, 1
      %s28 = scalar_select %p25, %s26, %s27
      %p31 = pneg %p25
      %p32 = scmp.eq.s32.totalorder %s16, 1
      %p33 = por %p31, %p32
      %p34 = scmp.ne.s32.totalorder %s26, %s29
      %p35 = scmp.eq.s32.totalorder %s16, 0
      %p36 = por %p34, %p35
      %p37 = scmp.ne.s32.totalorder %s26, %s29
      %p38 = scmp.eq.s32.totalorder %s21, 1
      %p39 = por %p37, %p38
      %p40 = scmp.ne.s32.totalorder %s29, %s30
      %p41 = scmp.eq.s32.totalorder %s21, 0
      %p42 = por %p40, %p41
      %p43 = scmp.ne.s32.totalorder %s29, %s30
      %p44 = scmp.eq.s32.totalorder %s22, 1
      %p45 = por %p43, %p44
      %p47 = scmp.ne.s32.totalorder %s30, %s46
      %p48 = scmp.eq.s32.totalorder %s22, 0
      %p49 = por %p47, %p48
      %s51 = sadd.s32 %s50, 1
      %p54 = scmp.eq.s32.totalorder %s16, 1
      %p55 = scmp.ne.s32.totalorder %s50, %s52
      %p56 = scmp.eq.s32.totalorder %s16, 0
      %p57 = por %p55, %p56
      %p58 = scmp.ne.s32.totalorder %s50, %s52
      %p59 = scmp.eq.s32.totalorder %s21, 1
      %p60 = por %p58, %p59
      %p61 = scmp.ne.s32.totalorder %s52, %s53
      %p62 = scmp.eq.s32.totalorder %s21, 0
      %p63 = por %p61, %p62
      %p64 = scmp.ne.s32.totalorder %s52, %s53
      %p65 = scmp.eq.s32.totalorder %s22, 1
      %p66 = por %p64, %p65
      %p68 = scmp.ne.s32.totalorder %s53, %s67
      %p69 = scmp.eq.s32.totalorder %s22, 0
      %p70 = por %p68, %p69
      %s72 = sadd.s32 %s71, 1
      %p75 = scmp.eq.s32.totalorder %s16, 1
      %p76 = scmp.ne.s32.totalorder %s71, %s73
      %p77 = scmp.eq.s32.totalorder %s16, 0
      %p78 = por %p76, %p77
      %p79 = scmp.ne.s32.totalorder %s71, %s73
      %p80 = scmp.eq.s32.totalorder %s21, 1
      %p81 = por %p79, %p80
      %p82 = scmp.ne.s32.totalorder %s73, %s74
      %p83 = scmp.eq.s32.totalorder %s21, 0
      %p84 = por %p82, %p83
      %p85 = scmp.ne.s32.totalorder %s73, %s74
      %p86 = scmp.eq.s32.totalorder %s22, 1
      %p87 = por %p85, %p86
      %p89 = scmp.ne.s32.totalorder %s74, %s88
      %p90 = scmp.eq.s32.totalorder %s22, 0
      %p91 = por %p89, %p90
      %s93 = sadd.s32 %s92, 1
      %p96 = scmp.eq.s32.totalorder %s16, 1
      %p97 = scmp.ne.s32.totalorder %s92, %s94
      %p98 = scmp.eq.s32.totalorder %s16, 0
      %p99 = por %p97, %p98
      %p100 = scmp.ne.s32.totalorder %s92, %s94
      %p101 = scmp.eq.s32.totalorder %s21, 1
      %p102 = por %p100, %p101
      %p103 = scmp.ne.s32.totalorder %s94, %s95
      %p104 = scmp.eq.s32.totalorder %s21, 0
      %p105 = por %p103, %p104
      %p106 = scmp.ne.s32.totalorder %s94, %s95
      %p107 = scmp.eq.s32.totalorder %s22, 1
      %p108 = por %p106, %p107
      %p110 = scmp.ne.s32.totalorder %s95, %s109
      %p111 = scmp.eq.s32.totalorder %s22, 0
      %p112 = por %p110, %p111
      %s113 = ssub.s32 %s16, %s23
      %p114 = scmp.eq.s32.totalorder %s113, 0
      %s116 = sadd.s32 %s115, 1
      %s117 = scalar_select %p114, %s115, %s116
      %p120 = pneg %p114
      %p121 = scmp.eq.s32.totalorder %s16, 1
      %p122 = por %p120, %p121
      %p123 = scmp.ne.s32.totalorder %s115, %s118
      %p124 = scmp.eq.s32.totalorder %s16, 0
      %p125 = por %p123, %p124
      %p126 = scmp.ne.s32.totalorder %s115, %s118
      %p127 = scmp.eq.s32.totalorder %s21, 1
      %p128 = por %p126, %p127
      %p129 = scmp.ne.s32.totalorder %s118, %s119
      %p130 = scmp.eq.s32.totalorder %s21, 0
      %p131 = por %p129, %p130
      %p132 = scmp.ne.s32.totalorder %s118, %s119
      %p133 = scmp.eq.s32.totalorder %s22, 1
      %p134 = por %p132, %p133
      %p136 = scmp.ne.s32.totalorder %s119, %s135
      %p137 = scmp.eq.s32.totalorder %s22, 0
      %p138 = por %p136, %p137
      %p139 = scmp.le.s32.totalorder 1, %s16
      %p140 = scmp.lt.s32.totalorder %s16, 3
      %p141 = pnand %p139, %p140
      %p142 = pneg %p141
      // Predicated region
      $region9: #{skeleton_emb_forward.2} parent=5 // pred_check
        _
      $region10: #{skeleton_emb_forward.2} parent=5 // pred_check_branch
        %144 = sbr.rel (%p141) target = $region12
      $region11: #{skeleton_emb_forward.2} parent=5 // pred_region
        %s145 = ssub.s32 %s16, 1
        // Predicated region
        $region13: #{skeleton_emb_forward.2} parent=11 // pred_check
          %p146 = pneg %p63
        $region14: #{skeleton_emb_forward.2} parent=11 // pred_check_branch
          %148 = sbr.rel (%p146) target = $region16
        $region15: #{skeleton_emb_forward.2} parent=11 // pred_region
          _
        $region16: #{skeleton_emb_forward.2} parent=11 // pred_fallthru
          _
        // Predicated region
        $region17: #{skeleton_emb_forward.2} parent=11 // pred_check
          %p149 = pneg %p84
        $region18: #{skeleton_emb_forward.2} parent=11 // pred_check_branch
          %151 = sbr.rel (%p149) target = $region20
        $region19: #{skeleton_emb_forward.2} parent=11 // pred_region
          _
        $region20: #{skeleton_emb_forward.2} parent=11 // pred_fallthru
          _
        // Predicated region
        $region21: #{skeleton_emb_forward.2} parent=11 // pred_check
          %p152 = pneg %p105
        $region22: #{skeleton_emb_forward.2} parent=11 // pred_check_branch
          %154 = sbr.rel (%p152) target = $region24
        $region23: #{skeleton_emb_forward.2} parent=11 // pred_region
          _
        $region24: #{skeleton_emb_forward.2} parent=11 // pred_fallthru
          _
      $region12: #{skeleton_emb_forward.2} parent=5 // pred_fallthru
        _
      %p155 = scmp.lt.s32.totalorder %s16, 2
      // Predicated region
      $region25: #{skeleton_emb_forward.2} parent=5 // pred_check
        %p156 = pneg %p155
      $region26: #{skeleton_emb_forward.2} parent=5 // pred_check_branch
        %158 = sbr.rel (%p156) target = $region28
      $region27: #{skeleton_emb_forward.2} parent=5 // pred_region
        // Predicated region
        $region29: #{skeleton_emb_forward.2} parent=27 // pred_check
          %p159 = pneg %p36
        $region30: #{skeleton_emb_forward.2} parent=27 // pred_check_branch
          %161 = sbr.rel (%p159) target = $region32
        $region31: #{skeleton_emb_forward.2} parent=27 // pred_region
          %s162 = sand.u32 %s26, 1
          %s163 = scalar_lea.sflag [#allocation3], %s162
          %s164 = sand.u32 %s26, 1
          %s165 = smul.addr %s164, 8
          %s166 = scalar_lea.vmem [#allocation2], %s165
          %168 = vsyncadd %s163, 0
          %s169 = smul.addr %s16, 8
          %s170 = scalar_lea.hbm %s0, %s169
          %s172 = sshll.u32 %s170, 4
          %s173 = int_to_ptr.hbm [resolvable:$true] %s172
          %s174 = sshll.u32 %s166, 4
          %s175 = int_to_ptr.vmem [resolvable:$true] %s174
          %177 = dma.hbm_to_vmem [thread:$0]  %s173, 128, %s175, %s163
        $region32: #{skeleton_emb_forward.2} parent=27 // pred_fallthru
          _
      $region28: #{skeleton_emb_forward.2} parent=5 // pred_fallthru
        _
      %p178 = scmp.le.s32.totalorder 1, %s16
      %p179 = scmp.lt.s32.totalorder %s16, 3
      %p180 = pnand %p178, %p179
      %p181 = pneg %p180
      // Predicated region
      $region33: #{skeleton_emb_forward.2} parent=5 // pred_check
        _
      $region34: #{skeleton_emb_forward.2} parent=5 // pred_check_branch
        %183 = sbr.rel (%p180) target = $region36
      $region35: #{skeleton_emb_forward.2} parent=5 // pred_region
        %s184 = ssub.s32 %s16, 1
        %s185 = sand.u32 %s29, 1
        %s186 = scalar_lea.sflag [#allocation3], %s185
        %s187 = sand.u32 %s29, 1
        %s188 = smul.addr %s187, 8
        %s189 = scalar_lea.vmem [#allocation2], %s188
        // Predicated region
        $region37: #{skeleton_emb_forward.2} parent=35 // pred_check
          %p190 = pneg %p42
        $region38: #{skeleton_emb_forward.2} parent=35 // pred_check_branch
          %192 = sbr.rel (%p190) target = $region40
        $region39: #{skeleton_emb_forward.2} parent=35 // pred_region
          %194 = dma.done %s186, 128
        $region40: #{skeleton_emb_forward.2} parent=35 // pred_fallthru
          _
        %s195 = sand.u32 %s29, 1
        %s196 = scalar_lea.sflag [#allocation3], %s195
        %s197 = sand.u32 %s29, 1
        %s198 = smul.addr %s197, 8
        %s199 = scalar_lea.vmem [#allocation2], %s198
        %p200 = pneg %p42
        %p201 = pneg %p39
        %p202 = pneg %p63
        %p203 = pneg %p60
        %p204 = pneg %p84
        %p205 = pneg %p81
        %p206 = pneg %p105
        %p207 = pneg %p102
        %p208 = pneg %p131
        %p209 = pneg %p128
        %s210 = sand.u32 %s118, 1
        %s211 = scalar_lea.sflag [#allocation4], %s210
        %s212 = sand.u32 %s118, 1
        %s213 = smul.addr %s212, 8
        %s214 = scalar_lea.vmem [#allocation5], %s213
        %v215 = vld [vmem:[%s2] sm:$0x1]
        %v216 = vld [vmem:[%s2 + $0x1] sm:$0x1]
        %v217 = vld [vmem:[%s2 + $0x2] sm:$0x1]
        %v218 = vld [vmem:[%s2 + $0x3] sm:$0x1]
        %v219 = vld [vmem:[%s189] sm:$0xff]
        %v220 = vld [vmem:[%s1] sm:$0xff]
        %v221 = vld [vmem:[%s1 + $0x8] sm:$0xff]
        %v222 = vld [vmem:[%s1 + $0x10] sm:$0xff]
        %v223 = vld [vmem:[%s1 + $0x18] sm:$0xff]
        %v224 = vld [vmem:[%s1 + $0x20] sm:$0xff]
        %v225 = vld [vmem:[%s1 + $0x28] sm:$0xff]
        %v226 = vperm.slane %v215, 0
        %vm227 = vcmask 392192
        %v229 = vsel %vm227, %v219, 0
        %231 = vmatpush.msra.mxu0 0.0
        %232 = vmatpush.msra.mxu0 0.0
        %233 = vmatpush.msra.mxu0 0.0
        %234 = vmatpush.msra.mxu0 0.0
        %235 = vmatpush.msra.mxu0 0.0
        %236 = vmatpush.msra.mxu0 0.0
        %237 = vmatpush.msra.mxu0 0.0
        %238 = vmatpush.msra.mxu0 0.0
        %239 = vmatpush.msra.mxu0 0.0
        %240 = vmatpush.msra.mxu0 0.0
        %241 = vmatpush.msra.mxu0 %v225
        %242 = vmatpush.msra.mxu0 %v224
        %243 = vmatpush.msra.mxu0 %v223
        %244 = vmatpush.msra.mxu0 %v222
        %245 = vmatpush.msra.mxu0 %v221
        %246 = vmatpush.msra.mxu0 %v220
        %247 = vmatmul.f32.gmra.mxu0 %v229
        %v248 = vpop.f32.mrf.mxu0
        %v249 = vadd.f32 %v226, %v248
        %250 = vdwg.mxu0
        %vm251 = vcmask 261120
        %v252 = vsel %vm251, %v249, 0.0
        %253 = vadd.xlane.f32.xlu0 %v252
        %v254 = vpop.xlane.xlu0 %253
        %v255 = vrcp.pop 32.0
        %v256 = vmul.f32 32.0, %v255
        %v257 = vsub.f32 1.0, %v256
        %v258 = vmul.f32 %v255, %v257
        %v259 = vadd.f32 %v255, %v258
        %vm260 = vweird.f32 %v255
        %v261 = vsel %vm260, %v255, %v259
        %v262 = vmul.f32 %v254, %v261
        %v263 = vsub.f32 %v249, %v262
        %v264 = vmul.f32 %v263, %v263
        %v265 = vsel %vm251, %v264, 0.0
        %266 = vadd.xlane.f32.xlu0 %v265
        %v267 = vpop.xlane.xlu0 %266
        %v268 = vmul.f32 %v267, %v261
        %v269 = vadd.f32 %v268, 1e-05
        %v270 = vrsqrt.pop %v269
        %v271 = vmul.f32 %v270, %v269
        %v272 = vmul.f32 %v271, %v270
        %v273 = vmul.f32 0.5, %v272
        %v274 = vsub.f32 1.5, %v273
        %v275 = vmul.f32 %v270, %v274
        %vm276 = vweird.f32 %v269
        %vm277 = vweird.f32 %v270
        %vm278 = vmor %vm276, %vm277
        %v279 = vsel %vm278, %v270, %v275
        %v280 = vmul.f32 %v263, %v279
        %v281 = vperm.slane %v216, 0
        %v282 = vmul.f32 %v280, %v281
        %v283 = vperm.slane %v217, 0
        %v284 = vadd.f32 %v282, %v283
        %v285 = vmax.f32 %v284, 0.0
        %v286 = vld [vmem:[%s3] sm:$0xff]
        %v287 = vld [vmem:[%s3 + $0x8] sm:$0xff]
        %v288 = vld [vmem:[%s3 + $0x10] sm:$0xff]
        %v289 = vld [vmem:[%s3 + $0x18] sm:$0xff]
        %v290 = vperm.slane %v218, 0
        %v292 = vsel %vm251, %v285, 0
        %294 = vmatpush.msra.mxu0 0.0
        %295 = vmatpush.msra.mxu0 0.0
        %296 = vmatpush.msra.mxu0 0.0
        %297 = vmatpush.msra.mxu0 0.0
        %298 = vmatpush.msra.mxu0 0.0
        %299 = vmatpush.msra.mxu0 0.0
        %300 = vmatpush.msra.mxu0 0.0
        %301 = vmatpush.msra.mxu0 0.0
        %302 = vmatpush.msra.mxu0 0.0
        %303 = vmatpush.msra.mxu0 0.0
        %304 = vmatpush.msra.mxu0 0.0
        %305 = vmatpush.msra.mxu0 0.0
        %306 = vmatpush.msra.mxu0 %v289
        %307 = vmatpush.msra.mxu0 %v288
        %308 = vmatpush.msra.mxu0 %v287
        %309 = vmatpush.msra.mxu0 %v286
        %310 = vmatmul.f32.gmra.mxu0 %v292
        %v311 = vpop.f32.mrf.mxu0
        %v312 = vadd.f32 %v290, %v311
        %313 = vdwg.mxu0
        %314 = vst.msk [vmem:[%s214] sm:$0xff] %vm251, %v312
        %s315 = sand.u32 %s118, 1
        %s316 = scalar_lea.sflag [#allocation4], %s315
        %s317 = sand.u32 %s118, 1
        %s318 = smul.addr %s317, 8
        %s319 = scalar_lea.vmem [#allocation5], %s318
        // Predicated region
        $region41: #{skeleton_emb_forward.2} parent=35 // pred_check
          %p320 = pneg %p128
        $region42: #{skeleton_emb_forward.2} parent=35 // pred_check_branch
          %322 = sbr.rel (%p320) target = $region44
        $region43: #{skeleton_emb_forward.2} parent=35 // pred_region
          %324 = vsyncadd %s316, 0
          %s325 = smul.addr %s21, 8
          %s326 = scalar_lea.hbm %s4, %s325
          %s328 = sshll.u32 %s319, 4
          %s329 = int_to_ptr.vmem [resolvable:$true] %s328
          %s330 = sshll.u32 %s326, 4
          %s331 = int_to_ptr.hbm [resolvable:$true] %s330
          %333 = dma.vmem_to_hbm [thread:$0]  %s329, 128, %s331, %s316
        $region44: #{skeleton_emb_forward.2} parent=35 // pred_fallthru
          _
      $region36: #{skeleton_emb_forward.2} parent=5 // pred_fallthru
        _
      %p334 = scmp.le.s32.totalorder 2, %s16
      // Predicated region
      $region45: #{skeleton_emb_forward.2} parent=5 // pred_check
        %p335 = pneg %p334
      $region46: #{skeleton_emb_forward.2} parent=5 // pred_check_branch
        %337 = sbr.rel (%p335) target = $region48
      $region47: #{skeleton_emb_forward.2} parent=5 // pred_region
        %s338 = ssub.s32 %s16, 2
        // Predicated region
        $region49: #{skeleton_emb_forward.2} parent=47 // pred_check
          %p339 = pneg %p134
        $region50: #{skeleton_emb_forward.2} parent=47 // pred_check_branch
          %341 = sbr.rel (%p339) target = $region52
        $region51: #{skeleton_emb_forward.2} parent=47 // pred_region
          %s342 = sand.u32 %s119, 1
          %s343 = scalar_lea.sflag [#allocation4], %s342
          %s344 = sand.u32 %s119, 1
          %s345 = smul.addr %s344, 8
          %s346 = scalar_lea.vmem [#allocation5], %s345
          %348 = dma.done %s343, 128
        $region52: #{skeleton_emb_forward.2} parent=47 // pred_fallthru
          _
      $region48: #{skeleton_emb_forward.2} parent=5 // pred_fallthru
        _
    $region6: #{skeleton_emb_forward.2} parent=1 // loop_footer
      %s20 = sadd.s32 1, %s16
    $region7: #{skeleton_emb_forward.2} parent=1 // loop_footer_branch
      %15 = sbr.rel target = $region3
    $region8: #{skeleton_emb_forward.2} parent=1 // loop_exit
      _
    %349 = vsyncpa [#allocation3], 1
    %s350 = scalar_lea.sflag [#allocation3], 1
    %351 = vsyncpa %s350, 1
    %352 = vsyncpa [#allocation4], 1
    %s353 = scalar_lea.sflag [#allocation4], 1
    %354 = vsyncpa %s353, 1

</llo_original>
